<compile_context>
chip_gen: v5e
topology: v5e:2x2
jax: 0.10.0
libtpu: 0.0.40
codegen_flags: <defaults>
</compile_context>

<pallas_src>
import jax
import jax.numpy as jnp
from jax.experimental import pallas as pl
from jax.experimental.pallas import tpu as pltpu


# ---------------- Pallas kernel (weighted readout only) -----------------

def _spiral_mul_kernel(x_ref, w_ref, o_ref):
    # Elementwise weighted readout on one lane-dense (TB, TC) tile.
    # Upcast to f32 for the multiply (free for f32 inputs; avoids bf16 VPU
    # limitations on v5e), store back in the output dtype.
    x = x_ref[...].astype(jnp.float32)
    w = w_ref[...].astype(jnp.float32)
    o_ref[...] = (x * w).astype(o_ref.dtype)


# ---------------- Tiling helpers -----------------

def _pick_tile(dim, unit, max_tile):
    """Largest multiple of `unit` that divides `dim`, capped at `max_tile`.
    If `dim` is not a multiple of `unit`, return `dim` (a full-extent block is
    always legal w.r.t. the (8,128) constraint)."""
    if dim <= 0 or dim % unit != 0:
        return dim
    t = min(dim, max(unit, (max_tile // unit) * unit))
    t = (t // unit) * unit
    while t > unit and dim % t != 0:
        t -= unit
    return t


# ---------------- Wrapper -----------------

def spiral_readout(features, weights=None, *, readout_dim=None, use_pallas=None):
    """features: (B, N, F).  weights: optional (B, N, F), same layout.
    Returns (B, readout_dim) with readout_dim == N * F, in the promoted input dtype.

    use_pallas: None -> auto (Pallas only above ~1 MiB); True/False to force."""
    B, N, F = features.shape
    D = N * F
    if readout_dim is None:
        readout_dim = D
    assert readout_dim == D, "readout_dim must equal nodes_per_graph * feat_dim"

    # The flatten is pure glue; the unweighted readout IS the flatten.
    x2d = features.reshape(B, D)
    if weights is None:
        return x2d

    w2d = weights.reshape(B, D)
    out_dtype = jnp.result_type(features.dtype, weights.dtype)
    itemsize = jnp.dtype(out_dtype).itemsize
    total_bytes = B * D * itemsize

    if use_pallas is None:
        use_pallas = total_bytes >= (1 << 20)  # tiny problems: let XLA fuse
    if not use_pallas:
        return (x2d * w2d).astype(out_dtype)

    # Lane-dense tiling: TC multiple of 128 along the flattened readout axis,
    # TB multiple of 8 along the batch axis, ~2 MiB per buffer so
    # 3 streams x 2 buffers stays far below scoped VMEM on every chip.
    tc = _pick_tile(D, 128, 16384)
    max_rows = max(8, (2 * 1024 * 1024) // max(1, tc * itemsize))
    tb = _pick_tile(B, 8, max_rows)

    # If shapes defeat divisor tiling (non-multiples) and the full-extent block
    # would be huge, fall back to XLA rather than risk VMEM pressure.
    if tb * tc * itemsize > (8 << 20):
        return (x2d * w2d).astype(out_dtype)

    grid = (B // tb, D // tc)
    block = pl.BlockSpec((tb, tc), lambda i, j: (i, j))

    # TODO(synk): optionally alias features -> output (input_output_aliases) when the
    # caller no longer needs the raw features, to drop one HBM allocation.
    out = pl.pallas_call(
        _spiral_mul_kernel,
        out_shape=jax.ShapeDtypeStruct((B, D), out_dtype),
        grid_spec=pltpu.PrefetchScalarGridSpec(
            num_scalar_prefetch=0,
            grid=grid,
            in_specs=[block, block],
            out_specs=block,
        ),
        compiler_params=pltpu.CompilerParams(
            dimension_semantics=("parallel", "parallel"),
        ),
    )(x2d, w2d)

    return out


# ---------------- Demo / self-check -----------------

if __name__ == "__main__":
    key = jax.random.PRNGKey(0)
    k1, k2 = jax.random.split(key)

    B = 2            # batch_size (number of graphs)
    N = 16           # nodes per graph
    F = 8            # per-node feature dim
    READOUT_DIM = N * F   # 128

    features = jax.random.normal(k1, (B, N, F), dtype=jnp.float32)
    weights = jax.random.normal(k2, (B, N, F), dtype=jnp.float32)

    # Weighted path through the Pallas kernel (forced: demo shapes are tiny).
    out_w = spiral_readout(features, weights, readout_dim=READOUT_DIM, use_pallas=True)
    out_w = jax.block_until_ready(out_w)
    ref_w = features.reshape(B, -1) * weights.reshape(B, -1)
    assert out_w.shape == (B, READOUT_DIM)
    assert out_w.dtype == features.dtype
    assert jnp.allclose(out_w, ref_w, atol=1e-6, rtol=1e-6)

    # Weighted path, bf16 I/O stays bf16 (no wrapper f32 casts).
    f_bf = features.astype(jnp.bfloat16)
    w_bf = weights.astype(jnp.bfloat16)
    out_bf = spiral_readout(f_bf, w_bf, readout_dim=READOUT_DIM, use_pallas=True)
    out_bf = jax.block_until_ready(out_bf)
    ref_bf = (f_bf.reshape(B, -1).astype(jnp.float32)
              * w_bf.reshape(B, -1).astype(jnp.float32)).astype(jnp.bfloat16)
    assert out_bf.dtype == jnp.bfloat16
    assert jnp.allclose(out_bf.astype(jnp.float32), ref_bf.astype(jnp.float32),
                        atol=1e-2, rtol=1e-2)

    # Weighted path, auto dispatch (tiny -> plain jnp, XLA-fusable).
    out_auto = jax.block_until_ready(spiral_readout(features, weights,
                                                    readout_dim=READOUT_DIM))
    assert jnp.allclose(out_auto, ref_w, atol=1e-6, rtol=1e-6)

    # Larger shape exercising the 2D divisor tiling (multiple grid steps).
    k3, k4 = jax.random.split(k2)
    Bb, Nb, Fb = 16, 256, 128          # (16, 32768) f32 = 2 MiB -> auto Pallas path
    fb = jax.random.normal(k3, (Bb, Nb, Fb), dtype=jnp.float32)
    wb = jax.random.normal(k4, (Bb, Nb, Fb), dtype=jnp.float32)
    out_big = jax.block_until_ready(spiral_readout(fb, wb))
    ref_big = fb.reshape(Bb, -1) * wb.reshape(Bb, -1)
    assert out_big.shape == (Bb, Nb * Fb)
    assert jnp.allclose(out_big, ref_big, atol=1e-6, rtol=1e-6)

    # Unweighted path: pure reshape, no kernel.
    out_nw = jax.block_until_ready(spiral_readout(features, None,
                                                  readout_dim=READOUT_DIM))
    assert out_nw.shape == (B, READOUT_DIM)
    assert jnp.allclose(out_nw, features.reshape(B, -1), atol=1e-6, rtol=1e-6)

    print("KERNEL_OK")
</pallas_src>

<mosaic_0001>
module attributes {stable_mosaic.version = 11 : i64} {
  func.func @_spiral_mul_kernel(%arg0: i32, %arg1: i32, %arg2: memref<2x128xf32, #tpu.memory_space<vmem>>, %arg3: memref<2x128xf32, #tpu.memory_space<vmem>>, %arg4: memref<2x128xf32, #tpu.memory_space<vmem>>) attributes {dimension_semantics = [#tpu.dimension_semantics<parallel>, #tpu.dimension_semantics<parallel>], iteration_bounds = array<i64: 1, 1>, scalar_prefetch = 0 : i64, scratch_operands = 0 : i64, tpu.core_type = #tpu.core_type<tc>, window_params = [{transform_indices = @transform_0, window_bounds = array<i64: 2, 128>}, {transform_indices = @transform_1, window_bounds = array<i64: 2, 128>}, {transform_indices = @transform_2, window_bounds = array<i64: 2, 128>}]} {
    %c0 = arith.constant 0 : index
    %c0_0 = arith.constant 0 : index
    %0 = vector.load %arg2[%c0, %c0_0] : memref<2x128xf32, #tpu.memory_space<vmem>>, vector<2x128xf32>
    %c0_1 = arith.constant 0 : index
    %c0_2 = arith.constant 0 : index
    %1 = vector.load %arg3[%c0_1, %c0_2] : memref<2x128xf32, #tpu.memory_space<vmem>>, vector<2x128xf32>
    %2 = arith.mulf %0, %1 : vector<2x128xf32>
    %c0_3 = arith.constant 0 : index
    %c0_4 = arith.constant 0 : index
    %3 = vector.load %arg4[%c0_3, %c0_4] : memref<2x128xf32, #tpu.memory_space<vmem>>, vector<2x128xf32>
    tpu.vector_store %arg4[%c0_3, %c0_4], %2 {strides = array<i32>} : memref<2x128xf32, #tpu.memory_space<vmem>>, vector<2x128xf32>,
    return
  }
  func.func @transform_0(%arg0: i32, %arg1: i32) -> (i32, i32) {
    %c0_i32 = arith.constant 0 : i32
    return %arg0, %arg1 : i32, i32
  }
  func.func @transform_1(%arg0: i32, %arg1: i32) -> (i32, i32) {
    %c0_i32 = arith.constant 0 : i32
    return %arg0, %arg1 : i32, i32
  }
  func.func @transform_2(%arg0: i32, %arg1: i32) -> (i32, i32) {
    %c0_i32 = arith.constant 0 : i32
    return %arg0, %arg1 : i32, i32
  }
}

</mosaic_0001>

<llo_original>
// kernel: tpu_custom_call.1
$region0: #{tpu_custom_call.1}
  #allocation0 [shape = 'u32[]', space=smem, size = 0x4, offset = 0x4, fixed_abs, tag = 'smem constant byte address 0x4 - core index']
  #allocation1 [shape = 'u32[72,128]{1,0:T(1,128)}', space=vmem, size = 0x9000, scoped, tag = 'internal scratch']
  %s0 = inlined_call_operand.hbm [shape: f32[2,128], index: 0, kind: input, shape index: {}]
  %s1 = inlined_call_operand.hbm [shape: f32[2,128], index: 1, kind: input, shape index: {}]
  %s2 = inlined_call_operand.hbm [shape: f32[2,128], index: 2, kind: output, shape index: {}]
  %s3 = sld [smem:[#allocation0]]
  $region26: #{tpu_custom_call.1} parent=0
    _
  %s5 = ssub.s32 1, %s3
  %s6 = scalar_select 0, %s5, %s3
  $region1: #{tpu_custom_call.1} parent=0
    #allocation2 [shape = 'u8[1024]{0}', space=vmem, size = 0x400, scoped, tag = 'input window, operand 0, single buffered']
    #allocation3 [shape = 's32[1]{0}', space=sflag, size = 0x4, scoped, tag = 'scoped memory for tpu_custom_call.1']
    #allocation4 [shape = 's32[1]{0}', space=sflag, size = 0x4, scoped, tag = 'scoped memory for tpu_custom_call.1']
    #allocation5 [shape = 'u8[1024]{0}', space=vmem, size = 0x400, scoped, tag = 'input window, operand 1, single buffered']
    #allocation6 [shape = 's32[1]{0}', space=sflag, size = 0x4, scoped, tag = 'scoped memory for tpu_custom_call.1']
    #allocation7 [shape = 'u8[1024]{0}', space=vmem, size = 0x400, scoped, tag = 'output window, operand 0, single buffered']
    %7 = vsyncpa [#allocation3], 0
    %8 = vsyncpa [#allocation6], 0
    %9 = vsyncpa [#allocation4], 0
    // Predicated region
    $region2: #{tpu_custom_call.1} parent=1 // pred_check
      _
    $region3: #{tpu_custom_call.1} parent=1 // pred_check_branch
      %11 = sbr.rel (0) target = $region5
    $region4: #{tpu_custom_call.1} parent=1 // pred_region
      %13 = vsyncadd [#allocation3], 0
      %s15 = sshll.u32 %s0, 4
      %s16 = int_to_ptr.hbm [resolvable:$true] %s15
      %s17 = sshll.u32 [#allocation2], 4
      %s18 = int_to_ptr.vmem [resolvable:$true] %s17
      %20 = dma.hbm_to_vmem [thread:$0]  %s16, 32, %s18, [#allocation3]
    $region5: #{tpu_custom_call.1} parent=1 // pred_fallthru
      _
    // Predicated region
    $region6: #{tpu_custom_call.1} parent=1 // pred_check
      _
    $region7: #{tpu_custom_call.1} parent=1 // pred_check_branch
      %22 = sbr.rel (0) target = $region9
    $region8: #{tpu_custom_call.1} parent=1 // pred_region
      %24 = vsyncadd [#allocation6], 0
      %s26 = sshll.u32 %s1, 4
      %s27 = int_to_ptr.hbm [resolvable:$true] %s26
      %s28 = sshll.u32 [#allocation5], 4
      %s29 = int_to_ptr.vmem [resolvable:$true] %s28
      %31 = dma.hbm_to_vmem [thread:$0]  %s27, 32, %s29, [#allocation6]
    $region9: #{tpu_custom_call.1} parent=1 // pred_fallthru
      _
    // Predicated region
    $region10: #{tpu_custom_call.1} parent=1 // pred_check
      _
    $region11: #{tpu_custom_call.1} parent=1 // pred_check_branch
      %33 = sbr.rel (0) target = $region13
    $region12: #{tpu_custom_call.1} parent=1 // pred_region
      %35 = dma.done [#allocation3], 32
    $region13: #{tpu_custom_call.1} parent=1 // pred_fallthru
      _
    // Predicated region
    $region14: #{tpu_custom_call.1} parent=1 // pred_check
      _
    $region15: #{tpu_custom_call.1} parent=1 // pred_check_branch
      %37 = sbr.rel (0) target = $region17
    $region16: #{tpu_custom_call.1} parent=1 // pred_region
      %39 = dma.done [#allocation6], 32
    $region17: #{tpu_custom_call.1} parent=1 // pred_fallthru
      _
    %v40 = vld [vmem:[#allocation2] sm:$0x3]
    %v41 = vld [vmem:[#allocation5] sm:$0x3]
    %v42 = vmul.f32 %v40, %v41
    %43 = vst [vmem:[#allocation7] sm:$0x3] %v42
    // Predicated region
    $region18: #{tpu_custom_call.1} parent=1 // pred_check
      _
    $region19: #{tpu_custom_call.1} parent=1 // pred_check_branch
      %45 = sbr.rel (0) target = $region21
    $region20: #{tpu_custom_call.1} parent=1 // pred_region
      %47 = vsyncadd [#allocation4], 0
      %s49 = sshll.u32 [#allocation7], 4
      %s50 = int_to_ptr.vmem [resolvable:$true] %s49
      %s51 = sshll.u32 %s2, 4
      %s52 = int_to_ptr.hbm [resolvable:$true] %s51
      %54 = dma.vmem_to_hbm [thread:$0]  %s50, 32, %s52, [#allocation4]
    $region21: #{tpu_custom_call.1} parent=1 // pred_fallthru
      _
    // Predicated region
    $region22: #{tpu_custom_call.1} parent=1 // pred_check
      _
    $region23: #{tpu_custom_call.1} parent=1 // pred_check_branch
      %56 = sbr.rel (0) target = $region25
    $region24: #{tpu_custom_call.1} parent=1 // pred_region
      %58 = dma.done [#allocation4], 32
    $region25: #{tpu_custom_call.1} parent=1 // pred_fallthru
      _
    %59 = vsyncpa [#allocation3], 1
    %60 = vsyncpa [#allocation6], 1
    %61 = vsyncpa [#allocation4], 1

</llo_original>
